<compile_context>
chip_gen: v7x
topology: tpu7x:2x2x1
jax: 0.10.0
libtpu: 0.0.40
codegen_flags: <defaults>
</compile_context>

<pallas_src>
import functools
import numpy as np

import jax
import jax.numpy as jnp
from jax.experimental import pallas as pl
from jax.experimental.pallas import tpu as pltpu


def _sig(x):
    # numerically stable logistic (both branches finite where selected)
    return jnp.where(x >= 0.0,
                     1.0 / (1.0 + jnp.exp(-x)),
                     jnp.exp(x) / (1.0 + jnp.exp(x)))


# ----------------------------------------------------------------------------
# Pallas kernel: fused linear  y = act(x @ Wt + b)   (row-tiled, pipelined)
# ----------------------------------------------------------------------------
def _linear_kernel(x_ref, wt_ref, b_ref, o_ref, *, act):
    y = jnp.dot(x_ref[...], wt_ref[...], preferred_element_type=jnp.float32) + b_ref[...]
    if act == "sigmoid":
        y = _sig(y)
    elif act == "tanh":
        y = jnp.tanh(y)
    o_ref[...] = y.astype(o_ref.dtype)


def pallas_linear(x, wt, b2=None, act="none", block_rows=512):
    # wt is pre-transposed (K, O); b2 is (1, O).
    M, K = x.shape
    O = wt.shape[1]
    if b2 is None:
        b2 = jnp.zeros((1, O), jnp.float32)
    tm = M if M <= block_rows else block_rows        # block_rows is a multiple of 8
    grid_m = pl.cdiv(M, tm)
    return pl.pallas_call(
        functools.partial(_linear_kernel, act=act),
        out_shape=jax.ShapeDtypeStruct((M, O), jnp.float32),
        grid=(grid_m,),
        in_specs=[pl.BlockSpec((tm, K), lambda i: (i, 0)),
                  pl.BlockSpec((K, O), lambda i: (0, 0)),
                  pl.BlockSpec((1, O), lambda i: (0, 0))],
        out_specs=pl.BlockSpec((tm, O), lambda i: (i, 0)),
        compiler_params=pltpu.CompilerParams(dimension_semantics=("parallel",)),
    )(x, wt, b2)


# ----------------------------------------------------------------------------
# Pallas kernel: GRU recurrence over a sequence.
# Input projection gi = x @ Wih_3H + b_ih is precomputed outside the serial loop
# (one batched matmul); the kernel carries h in VMEM and does a single fused
# (N,H)x(H,3H) hidden matmul per step.
# ----------------------------------------------------------------------------
def _gru_rec_kernel(gi_ref, whh_ref, bhh_ref, o_ref, h_ref, *, hidden):
    t = pl.program_id(0)

    @pl.when(t == 0)
    def _():
        h_ref[...] = jnp.zeros_like(h_ref)

    gi = gi_ref[0]                                   # (N, 3H)  columns [r | z | n]
    h = h_ref[...]                                   # (N, H)
    gh = jnp.dot(h, whh_ref[...], preferred_element_type=jnp.float32) + bhh_ref[...]
    H = hidden
    r = _sig(gi[:, :H] + gh[:, :H])
    z = _sig(gi[:, H:2 * H] + gh[:, H:2 * H])
    n = jnp.tanh(gi[:, 2 * H:] + r * gh[:, 2 * H:])
    h_new = (1.0 - z) * n + z * h
    h_ref[...] = h_new
    o_ref[0] = h_new


def pallas_gru(x_seq, gp):
    # gp: prepared GRU params {wih_t (Din,3H), whh_t (H,3H), bih (1,3H), bhh (1,3H)}
    T, N, Din = x_seq.shape
    H = gp['whh_t'].shape[0]
    # hoisted input projection: one big batched matmul over (T*N, Din)
    gi = pallas_linear(x_seq.reshape(T * N, Din), gp['wih_t'], gp['bih'])
    gi = gi.reshape(T, N, 3 * H)
    return pl.pallas_call(
        functools.partial(_gru_rec_kernel, hidden=H),
        out_shape=jax.ShapeDtypeStruct((T, N, H), jnp.float32),
        grid=(T,),
        in_specs=[pl.BlockSpec((1, N, 3 * H), lambda t: (t, 0, 0)),
                  pl.BlockSpec((H, 3 * H), lambda t: (0, 0)),
                  pl.BlockSpec((1, 3 * H), lambda t: (0, 0))],
        out_specs=pl.BlockSpec((1, N, H), lambda t: (t, 0, 0)),
        scratch_shapes=[pltpu.VMEM((N, H), jnp.float32)],
        compiler_params=pltpu.CompilerParams(dimension_semantics=("arbitrary",)),
    )(gi, gp['whh_t'], gp['bhh'])


# ----------------------------------------------------------------------------
# Pallas kernel: gated fusion  gate = sigmoid(A Wa + B Wb + b); out = (1-g)A + gB
# (the three fusion pairs per H_GAT share weights and are stacked along rows)
# ----------------------------------------------------------------------------
def _gated_fusion_kernel(a_ref, b_ref, wa_ref, wb_ref, bias_ref, o_ref):
    a = a_ref[...]
    b = b_ref[...]
    gate = _sig(jnp.dot(a, wa_ref[...], preferred_element_type=jnp.float32)
                + jnp.dot(b, wb_ref[...], preferred_element_type=jnp.float32)
                + bias_ref[...])
    o_ref[...] = (1.0 - gate) * a + gate * b


def pallas_gated_fusion(a, b, wa, wb, bias2, block_rows=512):
    M, D = a.shape
    O = wa.shape[1]
    tm = M if M <= block_rows else block_rows
    grid_m = pl.cdiv(M, tm)
    return pl.pallas_call(
        _gated_fusion_kernel,
        out_shape=jax.ShapeDtypeStruct((M, D), jnp.float32),
        grid=(grid_m,),
        in_specs=[pl.BlockSpec((tm, D), lambda i: (i, 0)),
                  pl.BlockSpec((tm, D), lambda i: (i, 0)),
                  pl.BlockSpec((D, O), lambda i: (0, 0)),
                  pl.BlockSpec((D, O), lambda i: (0, 0)),
                  pl.BlockSpec((1, O), lambda i: (0, 0))],
        out_specs=pl.BlockSpec((tm, D), lambda i: (i, 0)),
        compiler_params=pltpu.CompilerParams(dimension_semantics=("parallel",)),
    )(a, b, wa, wb, bias2)


# ----------------------------------------------------------------------------
# Pallas kernel: GraphConv per-edge message (attention logit via VPU row-dot,
# lin_r via MXU); logit packed into an extra lane of the message output.
# ----------------------------------------------------------------------------
def _edge_message_kernel(xi_ref, xj_ref, ew_ref, wai_ref, wan_ref, batt_ref,
                         wr_ref, br_ref, o_ref):
    xi = xi_ref[...]
    nb = ew_ref[...] * xj_ref[...]                   # edge_emb * x_j
    # attention logit: elementwise multiply + lane reduce (VPU/XLU, no O=1 matmul)
    att = (jnp.sum(xi * wai_ref[...], axis=1, keepdims=True)
           + jnp.sum(nb * wan_ref[...], axis=1, keepdims=True)
           + batt_ref[...])
    # F.leaky_relu(att, -0.1): negative slope of -0.1 (sign-flipped negatives)
    att = jnp.where(att >= 0.0, att, -0.1 * att)
    msg = jnp.dot(nb, wr_ref[...], preferred_element_type=jnp.float32) + br_ref[...]
    o_ref[...] = jnp.concatenate([msg, att], axis=1)


def pallas_edge_message(x_i, x_j, ew_emb, gp, block_rows=512):
    E, D = x_i.shape
    O = gp['wr_t'].shape[1]
    te = E if E <= block_rows else block_rows
    grid_e = pl.cdiv(E, te)
    row_spec = pl.BlockSpec((te, D), lambda i: (i, 0))
    return pl.pallas_call(
        _edge_message_kernel,
        out_shape=jax.ShapeDtypeStruct((E, O + 1), jnp.float32),
        grid=(grid_e,),
        in_specs=[row_spec, row_spec, row_spec,
                  pl.BlockSpec((1, D), lambda i: (0, 0)),
                  pl.BlockSpec((1, D), lambda i: (0, 0)),
                  pl.BlockSpec((1, 1), lambda i: (0, 0)),
                  pl.BlockSpec((D, O), lambda i: (0, 0)),
                  pl.BlockSpec((1, O), lambda i: (0, 0))],
        out_specs=pl.BlockSpec((te, O + 1), lambda i: (i, 0)),
        compiler_params=pltpu.CompilerParams(dimension_semantics=("parallel",)),
    )(x_i, x_j, ew_emb, gp['wai'], gp['wan'], gp['batt'], gp['wr_t'], gp['br'])


# ----------------------------------------------------------------------------
# Pallas kernel: contrastive aux-task loss (scalar output)
# ----------------------------------------------------------------------------
def _aux_task_kernel(a_ref, p_ref, n_ref, o_ref):
    a = a_ref[...]
    pos = jnp.exp(_sig(jnp.sum(a * p_ref[...], axis=1, keepdims=True)))
    neg = jnp.exp(_sig(jnp.sum(a * n_ref[...], axis=1, keepdims=True)))
    loss = -jnp.log(pos * pl.reciprocal(pos + neg, approx=True))
    o_ref[...] = jnp.mean(loss, keepdims=True)


def pallas_aux_task(a, pos, neg):
    N, D = a.shape
    out = pl.pallas_call(
        _aux_task_kernel,
        out_shape=jax.ShapeDtypeStruct((1, 1), jnp.float32),
        grid=(1,),
        in_specs=[pl.BlockSpec((N, D), lambda i: (0, 0)),
                  pl.BlockSpec((N, D), lambda i: (0, 0)),
                  pl.BlockSpec((N, D), lambda i: (0, 0))],
        out_specs=pl.BlockSpec((1, 1), lambda i: (0, 0)),
    )(a, pos, neg)
    return out[0, 0]


# ----------------------------------------------------------------------------
# Pallas kernel: row-dot + sigmoid (replaces O=1 linear_main_task matmul)
# ----------------------------------------------------------------------------
def _rowdot_sigmoid_kernel(x_ref, w_ref, o_ref):
    o_ref[...] = _sig(jnp.sum(x_ref[...] * w_ref[...], axis=1, keepdims=True))


def pallas_rowdot_sigmoid(x, w_row):
    M, D = x.shape
    return pl.pallas_call(
        _rowdot_sigmoid_kernel,
        out_shape=jax.ShapeDtypeStruct((M, 1), jnp.float32),
        grid=(1,),
        in_specs=[pl.BlockSpec((M, D), lambda i: (0, 0)),
                  pl.BlockSpec((1, D), lambda i: (0, 0))],
        out_specs=pl.BlockSpec((M, 1), lambda i: (0, 0)),
    )(x, w_row)


# ----------------------------------------------------------------------------
# Glue: segment softmax / scatter-add (data-dependent; plain JAX)
# ----------------------------------------------------------------------------
def segment_softmax(att, index, num_segments):
    # TODO(synk): torch_geometric.softmax / torch_scatter.scatter are data-dependent
    # gather/scatter ops kept in plain JAX.
    a = att[:, 0]
    seg_max = jax.ops.segment_max(a, index, num_segments=num_segments)
    a_exp = jnp.exp(a - seg_max[index])
    seg_sum = jax.ops.segment_sum(a_exp, index, num_segments=num_segments)
    return (a_exp / seg_sum[index])[:, None]


def build_group_edges(edge_index_list, edge_weight_list, cat_list, T, N):
    """Host-side (numpy) batching of edges across all T steps for each GNN group.

    Node indices are offset by step*N so one edge-message / scatter pass covers
    all steps.  Per-step 'group has no edges' fallback recorded as a node mask.
    """
    groups = {}
    specs = [('real_GNN', lambda c: c == 0),
             ('plan_GNN', lambda c: c == 1),
             ('other_GNN', lambda c: (c != 0) & (c != 1))]
    for name, sel in specs:
        srcs, dsts, ews = [], [], []
        step_has = np.zeros((T,), np.bool_)
        for t in range(T):
            ei = np.asarray(edge_index_list[t])
            ew = np.asarray(edge_weight_list[t])
            cat = np.asarray(cat_list[t])
            mask = sel(cat[ei[1]])
            if int(mask.sum()) > 0:
                step_has[t] = True
                srcs.append(ei[0][mask] + t * N)
                dsts.append(ei[1][mask] + t * N)
                ews.append(ew[mask])
        if srcs:
            src = np.concatenate(srcs).astype(np.int32)
            dst = np.concatenate(dsts).astype(np.int32)
            eww = np.concatenate(ews).astype(np.int32)
        else:
            src = dst = eww = np.zeros((0,), np.int32)
        node_mask = np.repeat(step_has.astype(np.float32), N)[:, None]   # (T*N, 1)
        groups[name] = {'src': jnp.asarray(src), 'dst': jnp.asarray(dst),
                        'ew': jnp.asarray(eww),
                        'node_mask': jnp.asarray(node_mask),
                        'n_edges': int(src.shape[0])}
    return groups


def graph_conv_batched(gp, x_all, group, num_nodes):
    O = gp['wr_t'].shape[1]
    x_i = x_all[group['dst']]
    x_j = x_all[group['src']]
    ew_emb = gp['edge_EMB'][group['ew']]
    packed = pallas_edge_message(x_i, x_j, ew_emb, gp)     # (E, O+1)
    msg = packed[:, :O]
    att_raw = packed[:, O:]
    att = segment_softmax(att_raw, group['dst'], num_nodes)
    prop = jax.ops.segment_sum(msg * att, group['dst'], num_segments=num_nodes)
    # per-step fallback: steps with no edges in this group keep x
    return jnp.where(group['node_mask'] > 0.0, prop, x_all)


def h_gat_batched(hp, x_all, groups, num_nodes):
    outs = {}
    for name in ('real_GNN', 'plan_GNN', 'other_GNN'):
        g = groups[name]
        if g['n_edges'] == 0:
            outs[name] = x_all
        else:
            outs[name] = graph_conv_batched(hp[name], x_all, g, num_nodes)
    real_o, plan_o, other_o = outs['real_GNN'], outs['plan_GNN'], outs['other_GNN']
    M = x_all.shape[0]
    # three gated fusions share weights -> one stacked call
    A = jnp.concatenate([real_o, real_o, plan_o], 0)
    B = jnp.concatenate([plan_o, other_o, other_o], 0)
    fused = pallas_gated_fusion(A, B, hp['gate_wa'], hp['gate_wb'], hp['gate_b2'])
    out1, out2, out3 = fused[:M], fused[M:2 * M], fused[2 * M:]
    all_f = jnp.concatenate([x_all, out1, out2, out3], axis=-1)
    out = pallas_linear(all_f, hp['agg_wt'], hp['agg_b2'], act='tanh')
    # H_GAT returns (out, Tensor([0])) -> aux part is exactly zero.
    return out


def seq_encoder_gru(sp, f, padding):
    h_seq = pallas_gru(f, sp)                      # (P, M, H)
    if padding is None:
        return h_seq[-1]
    P = padding.shape[1]
    final_index = (P - jnp.sum(padding, axis=1) - 1).astype(jnp.int32)   # (M,)
    f_r = jnp.transpose(h_seq, (1, 0, 2))                                # (M, P, H)
    mask = (jnp.arange(P)[None, :] <= final_index[:, None]).astype(jnp.float32)
    cnt = jnp.maximum(final_index.astype(jnp.float32) + 1.0, 1.0)
    mean = jnp.sum(f_r * mask[:, :, None], axis=1) / cnt[:, None]
    return jnp.where((final_index == -1)[:, None], sp['padding_weight'][None, :], mean)


def graph_pooling_first(batch_index_np, h):
    counts = np.bincount(np.asarray(batch_index_np))
    firsts = np.concatenate([[0], np.cumsum(counts)[:-1]]).astype(np.int32)
    return h[jnp.asarray(firsts)]


def get_aux_task(key, a, p):
    # TODO(synk): torch.randperm replaced by deterministic jax.random.permutation.
    perm = jax.random.permutation(key, p.shape[0])
    return pallas_aux_task(a, p, p[perm])


def gnn_lstm_block(prepped, x_all, T, N, edge_index_list, edge_weight_list,
                   batch_list, cat_list, layer_num):
    D = x_all.shape[1]
    groups = build_group_edges(edge_index_list, edge_weight_list, cat_list, T, N)
    for i in range(layer_num):
        x_all = h_gat_batched(prepped['GNN_LSTM'][i]['H_GAT'], x_all, groups, T * N)

    # graph pooling: first node of each graph per step (host-precomputed flat indices)
    pool_idx = []
    for t in range(T):
        counts = np.bincount(np.asarray(batch_list[t]))
        firsts = np.concatenate([[0], np.cumsum(counts)[:-1]]).astype(np.int32)
        pool_idx.append(firsts + t * N)
    B = pool_idx[0].shape[0]
    pool_idx = np.concatenate(pool_idx)
    spatial = x_all[jnp.asarray(pool_idx)].reshape(T, B, D)              # (T, B, D)

    gru_p = prepped['GNN_LSTM'][0]['GRU']
    h = pallas_gru(spatial, gru_p)

    # The GNN output for a step is independent of sequence position, so the noisy
    # re-run is just a gather of the already-computed spatial embeddings.
    # TODO(synk): PyTorch samples noise indices with Python `random`; fixed
    # deterministic choice (last int(0.2*T) steps replaced by step 0).
    noise_count = int(0.2 * T)
    seq_list = np.arange(T)
    if noise_count > 0:
        seq_list[-noise_count:] = 0
    rand_spatial = spatial[jnp.asarray(seq_list)]
    rand_h = pallas_gru(rand_spatial, gru_p)

    graph_aux_loss = jnp.float32(0.0)      # H_GAT always returns 0 aux
    return h, spatial, graph_aux_loss, rand_h


def t_closure_forward(prepped, batch, trade, layer_num, aux_key):
    T = len(batch['edge_indices'])
    N = batch['features'][0].shape[0]
    keys = jax.random.split(aux_key, T + 2)

    # ---- per-step feature encoding, batched across all T steps ----
    feats_all = jnp.concatenate(batch['features'], 0)                    # (T*N, 38)
    traj_all = jnp.concatenate(
        [jnp.transpose(tf, (2, 0, 1))[:, :, 2:-1] for tf in batch['traj_f']],
        axis=1)                                                          # (P, T*N, 3)
    traj_pad_all = jnp.concatenate(batch['traj_padding'], 0)             # (T*N, P)
    traj_feature = seq_encoder_gru(prepped['Traj_Encoder'], traj_all, traj_pad_all)
    uv_in = jnp.transpose(feats_all[:, 1:31].reshape(-1, 3, 10), (2, 0, 1))  # (10, T*N, 3)
    uv_feature = seq_encoder_gru(prepped['uv_Encoder'], uv_in, None)

    static = feats_all[:, 31:].astype(jnp.int32)
    lane = prepped['lane_EMB'][static[:, 0]]
    direction = prepped['direction_EMB'][static[:, 1]]
    fc = prepped['fc_EMB'][static[:, 4]]
    sc = prepped['speed_class_EMB'][static[:, 5]]
    park = prepped['park_EMB'][static[:, 6]]
    x_all = jnp.concatenate([lane, direction, fc, sc, park, traj_feature, uv_feature],
                            axis=-1)                                     # (T*N, node_dim)

    # per-step contrastive aux, batched: permutation restricted to each step's
    # node block; sum_t mean_step == T * mean_all because every step has N nodes.
    neg_idx = jnp.concatenate(
        [t * N + jax.random.permutation(keys[t], N) for t in range(T)], 0)
    aux_loss = trade * T * pallas_aux_task(uv_feature, traj_feature, traj_feature[neg_idx])

    LSTM_out, GNN_out, graph_aux_loss, rand_LSTM_out = gnn_lstm_block(
        prepped, x_all, T, N, batch['edge_indices'], batch['edge_weights'],
        batch['batches'], batch['cats'], layer_num)
    aux_loss = aux_loss + graph_aux_loss

    h_r = jnp.transpose(LSTM_out, (1, 0, 2))                             # (B, T, D)
    rh_r = jnp.transpose(rand_LSTM_out, (1, 0, 2))
    seq_pad = jnp.asarray(batch['seq_padding'], jnp.int32)               # (B,)
    idx_last = (seq_pad - 1)[:, None, None]
    predict_emb = jnp.take_along_axis(h_r, idx_last, axis=1)[:, 0, :]
    rand_predict_emb = jnp.take_along_axis(rh_r, idx_last, axis=1)[:, 0, :]
    idx_prev = jnp.where(seq_pad - 2 < 0, seq_pad - 1, seq_pad - 2)[:, None, None]
    seq_aux_sample = jnp.take_along_axis(h_r, idx_prev, axis=1)[:, 0, :]
    seq_aux_target = predict_emb

    aux_loss = aux_loss + trade * get_aux_task(keys[T], predict_emb, rand_predict_emb)
    # TODO(synk): F.dropout(p=0.3) is identity in eval mode; stochastic dropout skipped.
    target_main = graph_pooling_first(batch['batches'][-1], batch['targets'][-1])
    y_main = pallas_rowdot_sigmoid(predict_emb, prepped['linear_main_task_w'])
    aux_loss = aux_loss + trade * get_aux_task(keys[T + 1], seq_aux_target, seq_aux_sample)
    return y_main, target_main, aux_loss


# ----------------------------------------------------------------------------
# One-time parameter preparation (hoists all transposes/reshapes out of the
# per-step / per-layer loops).
# ----------------------------------------------------------------------------
def prepare_params(params):
    def prep_gru(g):
        H = g['w_hh'].shape[1]
        b_ih = g.get('b_ih')
        b_hh = g.get('b_hh')
        return {
            'wih_t': jnp.transpose(g['w_ih']),           # (Din, 3H), columns [r|z|n]
            'whh_t': jnp.transpose(g['w_hh']),           # (H, 3H)
            'bih': (jnp.zeros((3 * H,), jnp.float32) if b_ih is None else b_ih).reshape(1, 3 * H),
            'bhh': (jnp.zeros((3 * H,), jnp.float32) if b_hh is None else b_hh).reshape(1, 3 * H),
        }

    def prep_graph_conv(gc):
        D = gc['lin_att_w'].shape[1] // 2
        O = gc['lin_r_w'].shape[0]
        return {
            'wai': gc['lin_att_w'][:, :D],               # (1, D)  -> VPU row-dot
            'wan': gc['lin_att_w'][:, D:],               # (1, D)
            'batt': gc['lin_att_b'].reshape(1, 1),
            'wr_t': jnp.transpose(gc['lin_r_w']),        # (D, O)
            'br': gc['lin_r_b'].reshape(1, O),
            'edge_EMB': gc['edge_EMB'],
        }

    def prep_h_gat(hp):
        D = hp['gate_w'].shape[1] // 2
        Og = hp['gate_w'].shape[0]
        Oa = hp['agg_w'].shape[0]
        return {
            'real_GNN': prep_graph_conv(hp['real_GNN']),
            'plan_GNN': prep_graph_conv(hp['plan_GNN']),
            'other_GNN': prep_graph_conv(hp['other_GNN']),
            'gate_wa': jnp.transpose(hp['gate_w'][:, :D]),   # (D, Og)
            'gate_wb': jnp.transpose(hp['gate_w'][:, D:]),   # (D, Og)
            'gate_b2': hp['gate_b'].reshape(1, Og),
            'agg_wt': jnp.transpose(hp['agg_w']),            # (4D, Oa)
            'agg_b2': hp['agg_b'].reshape(1, Oa),
        }

    return {
        'GNN_LSTM': [{'H_GAT': prep_h_gat(l['H_GAT']), 'GRU': prep_gru(l['GRU'])}
                     for l in params['GNN_LSTM']],
        'Traj_Encoder': {**prep_gru(params['Traj_Encoder']),
                         'padding_weight': params['Traj_Encoder']['padding_weight']},
        'uv_Encoder': {**prep_gru(params['uv_Encoder']),
                       'padding_weight': params['uv_Encoder']['padding_weight']},
        'linear_main_task_w': params['linear_main_task_w'],     # (1, node_dim)
        'lane_EMB': params['lane_EMB'],
        'direction_EMB': params['direction_EMB'],
        'fc_EMB': params['fc_EMB'],
        'speed_class_EMB': params['speed_class_EMB'],
        'park_EMB': params['park_EMB'],
    }


# ----------------------------------------------------------------------------
# Deterministic parameter initialization (synthetic, no checkpoint loads)
# ----------------------------------------------------------------------------
def init_params(key, node_dim, static_dim, emb_dim, layer_num):
    keys = iter(jax.random.split(key, 256))

    def u(shape, lo=-0.1, hi=0.1):
        return jax.random.uniform(next(keys), shape, jnp.float32, lo, hi)

    def gru_params(in_dim, hid, bias):
        p = {'w_ih': u((3 * hid, in_dim)), 'w_hh': u((3 * hid, hid))}
        p['b_ih'] = u((3 * hid,)) if bias else None
        p['b_hh'] = u((3 * hid,)) if bias else None
        return p

    def graph_conv_params(in_c, out_c):
        return {'lin_r_w': u((out_c, in_c)), 'lin_r_b': u((out_c,)),
                'lin_att_w': u((1, 2 * in_c)), 'lin_att_b': u((1,)),
                'edge_EMB': u((10, out_c), 0.0, 1.0)}

    def h_gat_params(in_c, out_c):
        return {'real_GNN': graph_conv_params(in_c, out_c),
                'plan_GNN': graph_conv_params(in_c, out_c),
                'other_GNN': graph_conv_params(in_c, out_c),
                'gate_w': u((out_c, 2 * in_c)), 'gate_b': u((out_c,)),
                'agg_w': u((out_c, 4 * in_c)), 'agg_b': u((out_c,))}

    return {
        'GNN_LSTM': [{'H_GAT': h_gat_params(node_dim, node_dim),
                      'GRU': gru_params(node_dim, node_dim, True)}
                     for _ in range(layer_num)],
        'Traj_Encoder': {**gru_params(3, emb_dim, False),
                         'padding_weight': u((emb_dim,), -1.0, 1.0)},
        'uv_Encoder': {**gru_params(3, emb_dim, False),
                       'padding_weight': u((emb_dim,), -1.0, 1.0)},
        'linear_main_task_w': u((1, node_dim)),
        'lane_EMB': u((10, static_dim), 0.0, 1.0),
        'direction_EMB': u((10, static_dim), 0.0, 1.0),
        'fc_EMB': u((10, static_dim), 0.0, 1.0),
        'speed_class_EMB': u((10, static_dim), 0.0, 1.0),
        'park_EMB': u((10, static_dim), 0.0, 1.0),
    }


if __name__ == "__main__":
    key = jax.random.PRNGKey(0)
    T, B, NPG = 5, 2, 4                 # time steps, graphs per batch, nodes per graph
    N = B * NPG                         # nodes per snapshot
    P = 5                               # traj point samples
    E = 10                              # edges per snapshot
    static_dim, emb_dim = 4, 6
    node_dim = 5 * static_dim + 2 * emb_dim    # 32 (= concat of 5 statics + traj + uv)
    layer_num, trade = 1, 0.1

    pkey, dkey, akey = jax.random.split(key, 3)
    params = init_params(pkey, node_dim, static_dim, emb_dim, layer_num)
    prepped = prepare_params(params)

    dkeys = iter(jax.random.split(dkey, 128))
    features_l, traj_f_l, traj_pad_l = [], [], []
    edge_index_l, edge_weight_l, batch_l, cat_l, target_l = [], [], [], [], []
    for step in range(T):
        cat_np = (np.arange(N) % 3).astype(np.int64)
        uv = jax.random.uniform(next(dkeys), (N, 30), jnp.float32)
        static_idx = jax.random.randint(next(dkeys), (N, 7), 0, 10).astype(jnp.float32)
        feat = jnp.concatenate(
            [jnp.asarray(cat_np, jnp.float32)[:, None], uv, static_idx], axis=1)  # (N, 38)
        features_l.append(feat)
        traj_f_l.append(jax.random.uniform(next(dkeys), (N, 6, P), jnp.float32))
        pad = (jax.random.uniform(next(dkeys), (N, P)) < 0.3).astype(jnp.float32)
        if step == 0:
            pad = pad.at[0].set(1.0)     # hit the padding_weight branch
        traj_pad_l.append(pad)
        edge_index_l.append(np.asarray(jax.random.randint(next(dkeys), (2, E), 0, N)))
        edge_weight_l.append(np.asarray(jax.random.randint(next(dkeys), (E,), 0, 10)))
        batch_l.append(np.repeat(np.arange(B), NPG))
        cat_l.append(cat_np)
        target_l.append((jax.random.uniform(next(dkeys), (N, 1)) > 0.5).astype(jnp.float32))

    batch = {
        'features': features_l, 'traj_f': traj_f_l, 'traj_padding': traj_pad_l,
        'edge_indices': edge_index_l, 'edge_weights': edge_weight_l,
        'batches': batch_l, 'cats': cat_l, 'targets': target_l,
        'seq_padding': np.array([1, 4]),     # final index per order sequence (batch_size,)
    }

    y_main, target_main, aux_loss = t_closure_forward(prepped, batch, trade, layer_num, akey)
    jax.block_until_ready((y_main, target_main, aux_loss))
    assert y_main.shape == (B, 1) and target_main.shape == (B, 1)
    print("KERNEL_OK")
</pallas_src>

<mosaic_0001>
module attributes {stable_mosaic.version = 11 : i64} {
  func.func @_linear_kernel(%arg0: i32, %arg1: memref<200x3xf32, #tpu.memory_space<vmem>>, %arg2: memref<3x18xf32, #tpu.memory_space<vmem>>, %arg3: memref<1x18xf32, #tpu.memory_space<vmem>>, %arg4: memref<200x18xf32, #tpu.memory_space<vmem>>) attributes {dimension_semantics = [#tpu.dimension_semantics<parallel>], iteration_bounds = array<i64: 1>, scalar_prefetch = 0 : i64, scratch_operands = 0 : i64, tpu.core_type = #tpu.core_type<tc>, window_params = [{transform_indices = @transform_0, window_bounds = array<i64: 200, 3>}, {pipeline_mode = #tpu.pipeline_mode<synchronous>, transform_indices = @transform_1, window_bounds = array<i64: 3, 18>}, {pipeline_mode = #tpu.pipeline_mode<synchronous>, transform_indices = @transform_2, window_bounds = array<i64: 1, 18>}, {transform_indices = @transform_3, window_bounds = array<i64: 200, 18>}]} {
    %c0 = arith.constant 0 : index
    %c0_0 = arith.constant 0 : index
    %0 = vector.load %arg1[%c0, %c0_0] : memref<200x3xf32, #tpu.memory_space<vmem>>, vector<200x3xf32>
    %c0_1 = arith.constant 0 : index
    %c0_2 = arith.constant 0 : index
    %1 = vector.load %arg2[%c0_1, %c0_2] : memref<3x18xf32, #tpu.memory_space<vmem>>, vector<3x18xf32>
    %cst = arith.constant dense<0.000000e+00> : vector<200x18xf32>
    %2 = tpu.matmul %0, %1, %cst {dimension_numbers = #tpu.dot_dimension_numbers<[1], [0], [0], [1], [0, 0, 1, 1], [], []>} : vector<200x3xf32>, vector<3x18xf32>, vector<200x18xf32> -> vector<200x18xf32>
    %c0_3 = arith.constant 0 : index
    %c0_4 = arith.constant 0 : index
    %3 = vector.load %arg3[%c0_3, %c0_4] : memref<1x18xf32, #tpu.memory_space<vmem>>, vector<1x18xf32>
    %4 = vector.broadcast %3 : vector<1x18xf32> to vector<200x18xf32>
    %5 = arith.addf %2, %4 : vector<200x18xf32>
    %c0_5 = arith.constant 0 : index
    %c0_6 = arith.constant 0 : index
    %6 = vector.load %arg4[%c0_5, %c0_6] : memref<200x18xf32, #tpu.memory_space<vmem>>, vector<200x18xf32>
    tpu.vector_store %arg4[%c0_5, %c0_6], %5 {strides = array<i32>} : memref<200x18xf32, #tpu.memory_space<vmem>>, vector<200x18xf32>,
    return
  }
  func.func @transform_0(%arg0: i32) -> (i32, i32) {
    %c0_i32 = arith.constant 0 : i32
    %c0_i32_0 = arith.constant 0 : i32
    return %arg0, %c0_i32 : i32, i32
  }
  func.func @transform_1(%arg0: i32) -> (i32, i32) {
    %c0_i32 = arith.constant 0 : i32
    %c0_i32_0 = arith.constant 0 : i32
    %c0_i32_1 = arith.constant 0 : i32
    return %c0_i32, %c0_i32_0 : i32, i32
  }
  func.func @transform_2(%arg0: i32) -> (i32, i32) {
    %c0_i32 = arith.constant 0 : i32
    %c0_i32_0 = arith.constant 0 : i32
    %c0_i32_1 = arith.constant 0 : i32
    return %c0_i32, %c0_i32_0 : i32, i32
  }
  func.func @transform_3(%arg0: i32) -> (i32, i32) {
    %c0_i32 = arith.constant 0 : i32
    %c0_i32_0 = arith.constant 0 : i32
    return %arg0, %c0_i32 : i32, i32
  }
}

</mosaic_0001>

<llo_original>
// kernel: tpu_custom_call.1
$region0: #{tpu_custom_call.1}
  #allocation0 [shape = 'u32[]', space=smem, size = 0x4, offset = 0x4, fixed_abs, tag = 'smem constant byte address 0x4 - core index']
  #allocation1 [shape = 'u32[144,128]{1,0:T(1,128)}', space=vmem, size = 0x12000, scoped, tag = 'internal scratch']
  %s0 = inlined_call_operand.vmem [shape: f32[200,3], index: 0, kind: input, shape index: {}]
  %s1 = inlined_call_operand.vmem [shape: f32[3,18], index: 1, kind: input, shape index: {}]
  %s2 = inlined_call_operand.vmem [shape: f32[1,18], index: 2, kind: input, shape index: {}]
  %s3 = inlined_call_operand.vmem [shape: f32[200,18], index: 3, kind: output, shape index: {}]
  %s4 = sld [smem:[#allocation0]]
  $region22: #{tpu_custom_call.1} parent=0
    _
  %s6 = ssub.s32 1, %s4
  %s7 = scalar_select 0, %s6, %s4
  // Predicated region
  $region2: #{tpu_custom_call.1} parent=0 // pred_check
    _
  $region3: #{tpu_custom_call.1} parent=0 // pred_check_branch
    %9 = sbr.rel (0) target = $region5
  $region4: #{tpu_custom_call.1} parent=0 // pred_region
    _
  $region5: #{tpu_custom_call.1} parent=0 // pred_fallthru
    _
  // Predicated region
  $region6: #{tpu_custom_call.1} parent=0 // pred_check
    _
  $region7: #{tpu_custom_call.1} parent=0 // pred_check_branch
    %11 = sbr.rel (0) target = $region9
  $region8: #{tpu_custom_call.1} parent=0 // pred_region
    _
  $region9: #{tpu_custom_call.1} parent=0 // pred_fallthru
    _
  // Predicated region
  $region10: #{tpu_custom_call.1} parent=0 // pred_check
    _
  $region11: #{tpu_custom_call.1} parent=0 // pred_check_branch
    %13 = sbr.rel (0) target = $region13
  $region12: #{tpu_custom_call.1} parent=0 // pred_region
    _
  $region13: #{tpu_custom_call.1} parent=0 // pred_fallthru
    _
  %v14 = vld [vmem:[%s0] sm:$0xff]
  %v15 = vld [vmem:[%s0 + $0x8] sm:$0xff]
  %v16 = vld [vmem:[%s0 + $0x10] sm:$0xff]
  %v17 = vld [vmem:[%s0 + $0x18] sm:$0xff]
  %v18 = vld [vmem:[%s0 + $0x20] sm:$0xff]
  %v19 = vld [vmem:[%s0 + $0x28] sm:$0xff]
  %v20 = vld [vmem:[%s0 + $0x30] sm:$0xff]
  %v21 = vld [vmem:[%s0 + $0x38] sm:$0xff]
  %v22 = vld [vmem:[%s0 + $0x40] sm:$0xff]
  %v23 = vld [vmem:[%s0 + $0x48] sm:$0xff]
  %v24 = vld [vmem:[%s0 + $0x50] sm:$0xff]
  %v25 = vld [vmem:[%s0 + $0x58] sm:$0xff]
  %v26 = vld [vmem:[%s0 + $0x60] sm:$0xff]
  %v27 = vld [vmem:[%s0 + $0x68] sm:$0xff]
  %v28 = vld [vmem:[%s0 + $0x70] sm:$0xff]
  %v29 = vld [vmem:[%s0 + $0x78] sm:$0xff]
  %v30 = vld [vmem:[%s0 + $0x80] sm:$0xff]
  %v31 = vld [vmem:[%s0 + $0x88] sm:$0xff]
  %v32 = vld [vmem:[%s0 + $0x90] sm:$0xff]
  %v33 = vld [vmem:[%s0 + $0x98] sm:$0xff]
  %v34 = vld [vmem:[%s0 + $0xa0] sm:$0xff]
  %v35 = vld [vmem:[%s0 + $0xa8] sm:$0xff]
  %v36 = vld [vmem:[%s0 + $0xb0] sm:$0xff]
  %v37 = vld [vmem:[%s0 + $0xb8] sm:$0xff]
  %v38 = vld [vmem:[%s0 + $0xc0] sm:$0xff]
  %v39 = vld [vmem:[%s1] sm:$0x7]
  %v40 = vld [vmem:[%s2] sm:$0x1]
  %v42 = vlaneseq
  %v43 = vshrl.u32 %v42, 7
  %v44 = vsub.s32 0, %v43
  %v45 = vrot.slane %v40, %v44
  %vm47 = vcmask 23552
  %v49 = vsel %vm47, %v14, 0
  %v52 = vsel %vm47, %v15, 0
  %v55 = vsel %vm47, %v16, 0
  %v58 = vsel %vm47, %v17, 0
  %v61 = vsel %vm47, %v18, 0
  %v64 = vsel %vm47, %v19, 0
  %v67 = vsel %vm47, %v20, 0
  %v70 = vsel %vm47, %v21, 0
  %v73 = vsel %vm47, %v22, 0
  %v76 = vsel %vm47, %v23, 0
  %v79 = vsel %vm47, %v24, 0
  %v82 = vsel %vm47, %v25, 0
  %v85 = vsel %vm47, %v26, 0
  %v88 = vsel %vm47, %v27, 0
  %v91 = vsel %vm47, %v28, 0
  %v94 = vsel %vm47, %v29, 0
  %v97 = vsel %vm47, %v30, 0
  %v100 = vsel %vm47, %v31, 0
  %v103 = vsel %vm47, %v32, 0
  %v106 = vsel %vm47, %v33, 0
  %v109 = vsel %vm47, %v34, 0
  %v112 = vsel %vm47, %v35, 0
  %v115 = vsel %vm47, %v36, 0
  %v118 = vsel %vm47, %v37, 0
  %v121 = vsel %vm47, %v38, 0
  %vm123 = vcmask 1042432
  %v125 = vsel %vm123, %v39, 0
  %127 = vmatprep.subr.mxu0 0.0
  %128 = vmatpush1.msra.mxu0 %v125
  %129 = vmatprep.subr.mxu0 0.0
  %130 = vmatpush1.msra.mxu0 0.0
  %131 = vmatprep.subr.mxu0 0.0
  %132 = vmatpush1.msra.mxu0 0.0
  %133 = vmatprep.subr.mxu0 0.0
  %134 = vmatpush1.msra.mxu0 0.0
  %135 = vmatprep.subr.mxu0 0.0
  %136 = vmatpush1.msra.mxu0 0.0
  %137 = vmatprep.subr.mxu0 0.0
  %138 = vmatpush1.msra.mxu0 0.0
  %139 = vmatprep.subr.mxu0 0.0
  %140 = vmatpush1.msra.mxu0 0.0
  %141 = vmatprep.subr.mxu0 0.0
  %142 = vmatpush1.msra.mxu0 0.0
  %143 = vmatprep.subr.mxu0 0.0
  %144 = vmatpush1.msra.mxu0 0.0
  %145 = vmatprep.subr.mxu0 0.0
  %146 = vmatpush1.msra.mxu0 0.0
  %147 = vmatprep.subr.mxu0 0.0
  %148 = vmatpush1.msra.mxu0 0.0
  %149 = vmatprep.subr.mxu0 0.0
  %150 = vmatpush1.msra.mxu0 0.0
  %151 = vmatprep.subr.mxu0 0.0
  %152 = vmatpush1.msra.mxu0 0.0
  %153 = vmatprep.subr.mxu0 0.0
  %154 = vmatpush1.msra.mxu0 0.0
  %155 = vmatprep.subr.mxu0 0.0
  %156 = vmatpush1.msra.mxu0 0.0
  %157 = vmatprep.subr.mxu0 0.0
  %158 = vmatpush1.msra.mxu0 0.0
  %159 = vmatprep.subr.mxu0 0.0
  %160 = vmatpush1.msra.mxu0 0.0
  %161 = vmatprep.subr.mxu0 0.0
  %162 = vmatpush1.msra.mxu0 0.0
  %163 = vmatprep.subr.mxu0 0.0
  %164 = vmatpush1.msra.mxu0 0.0
  %165 = vmatprep.subr.mxu0 0.0
  %166 = vmatpush1.msra.mxu0 0.0
  %167 = vmatprep.subr.mxu0 0.0
  %168 = vmatpush1.msra.mxu0 0.0
  %169 = vmatprep.subr.mxu0 0.0
  %170 = vmatpush1.msra.mxu0 0.0
  %171 = vmatprep.subr.mxu0 0.0
  %172 = vmatpush1.msra.mxu0 0.0
  %173 = vmatprep.subr.mxu0 0.0
  %174 = vmatpush1.msra.mxu0 0.0
  %175 = vmatprep.subr.mxu0 0.0
  %176 = vmatpush1.msra.mxu0 0.0
  %177 = vmatprep.subr.mxu0 0.0
  %178 = vmatpush1.msra.mxu0 0.0
  %179 = vmatprep.subr.mxu0 0.0
  %180 = vmatpush1.msra.mxu0 0.0
  %181 = vmatprep.subr.mxu0 0.0
  %182 = vmatpush1.msra.mxu0 0.0
  %183 = vmatprep.subr.mxu0 0.0
  %184 = vmatpush1.msra.mxu0 0.0
  %185 = vmatprep.subr.mxu0 0.0
  %186 = vmatpush1.msra.mxu0 0.0
  %187 = vmatprep.subr.mxu0 0.0
  %188 = vmatpush1.msra.mxu0 0.0
  %189 = vmatprep.subr.mxu0 0.0
  %190 = vmatpush1.msra.mxu0 0.0
  %191 = vmatprep.mubr.f32.mxu0 0.0
  %192 = vmatmul.mubr.f32.gmra.mrb[0].mxu0 %v49
  %v193 = vpop.f32.mrb[0].mxu0
  %v194 = vadd.f32 %v45, %v193
  %v195 = vpop.f32.mrb[0].mxu0
  %196 = vmatprep.mubr.f32.mxu0 0.0
  %197 = vmatmul.mubr.f32.gmra.mrb[0].mxu0 %v52
  %v198 = vpop.f32.mrb[0].mxu0
  %v199 = vadd.f32 %v45, %v198
  %v200 = vpop.f32.mrb[0].mxu0
  %201 = vmatprep.mubr.f32.mxu0 0.0
  %202 = vmatmul.mubr.f32.gmra.mrb[0].mxu0 %v55
  %v203 = vpop.f32.mrb[0].mxu0
  %v204 = vadd.f32 %v45, %v203
  %v205 = vpop.f32.mrb[0].mxu0
  %206 = vmatprep.mubr.f32.mxu0 0.0
  %207 = vmatmul.mubr.f32.gmra.mrb[0].mxu0 %v58
  %v208 = vpop.f32.mrb[0].mxu0
  %v209 = vadd.f32 %v45, %v208
  %v210 = vpop.f32.mrb[0].mxu0
  %211 = vmatprep.mubr.f32.mxu0 0.0
  %212 = vmatmul.mubr.f32.gmra.mrb[0].mxu0 %v61
  %v213 = vpop.f32.mrb[0].mxu0
  %v214 = vadd.f32 %v45, %v213
  %v215 = vpop.f32.mrb[0].mxu0
  %216 = vmatprep.mubr.f32.mxu0 0.0
  %217 = vmatmul.mubr.f32.gmra.mrb[0].mxu0 %v64
  %v218 = vpop.f32.mrb[0].mxu0
  %v219 = vadd.f32 %v45, %v218
  %v220 = vpop.f32.mrb[0].mxu0
  %221 = vmatprep.mubr.f32.mxu0 0.0
  %222 = vmatmul.mubr.f32.gmra.mrb[0].mxu0 %v67
  %v223 = vpop.f32.mrb[0].mxu0
  %v224 = vadd.f32 %v45, %v223
  %v225 = vpop.f32.mrb[0].mxu0
  %226 = vmatprep.mubr.f32.mxu0 0.0
  %227 = vmatmul.mubr.f32.gmra.mrb[0].mxu0 %v70
  %v228 = vpop.f32.mrb[0].mxu0
  %v229 = vadd.f32 %v45, %v228
  %v230 = vpop.f32.mrb[0].mxu0
  %231 = vmatprep.mubr.f32.mxu0 0.0
  %232 = vmatmul.mubr.f32.gmra.mrb[0].mxu0 %v73
  %v233 = vpop.f32.mrb[0].mxu0
  %v234 = vadd.f32 %v45, %v233
  %v235 = vpop.f32.mrb[0].mxu0
  %236 = vmatprep.mubr.f32.mxu0 0.0
  %237 = vmatmul.mubr.f32.gmra.mrb[0].mxu0 %v76
  %v238 = vpop.f32.mrb[0].mxu0
  %v239 = vadd.f32 %v45, %v238
  %v240 = vpop.f32.mrb[0].mxu0
  %241 = vmatprep.mubr.f32.mxu0 0.0
  %242 = vmatmul.mubr.f32.gmra.mrb[0].mxu0 %v79
  %v243 = vpop.f32.mrb[0].mxu0
  %v244 = vadd.f32 %v45, %v243
  %v245 = vpop.f32.mrb[0].mxu0
  %246 = vmatprep.mubr.f32.mxu0 0.0
  %247 = vmatmul.mubr.f32.gmra.mrb[0].mxu0 %v82
  %v248 = vpop.f32.mrb[0].mxu0
  %v249 = vadd.f32 %v45, %v248
  %v250 = vpop.f32.mrb[0].mxu0
  %251 = vmatprep.mubr.f32.mxu0 0.0
  %252 = vmatmul.mubr.f32.gmra.mrb[0].mxu0 %v85
  %v253 = vpop.f32.mrb[0].mxu0
  %v254 = vadd.f32 %v45, %v253
  %v255 = vpop.f32.mrb[0].mxu0
  %256 = vmatprep.mubr.f32.mxu0 0.0
  %257 = vmatmul.mubr.f32.gmra.mrb[0].mxu0 %v88
  %v258 = vpop.f32.mrb[0].mxu0
  %v259 = vadd.f32 %v45, %v258
  %v260 = vpop.f32.mrb[0].mxu0
  %261 = vmatprep.mubr.f32.mxu0 0.0
  %262 = vmatmul.mubr.f32.gmra.mrb[0].mxu0 %v91
  %v263 = vpop.f32.mrb[0].mxu0
  %v264 = vadd.f32 %v45, %v263
  %v265 = vpop.f32.mrb[0].mxu0
  %266 = vmatprep.mubr.f32.mxu0 0.0
  %267 = vmatmul.mubr.f32.gmra.mrb[0].mxu0 %v94
  %v268 = vpop.f32.mrb[0].mxu0
  %v269 = vadd.f32 %v45, %v268
  %v270 = vpop.f32.mrb[0].mxu0
  %271 = vmatprep.mubr.f32.mxu0 0.0
  %272 = vmatmul.mubr.f32.gmra.mrb[0].mxu0 %v97
  %v273 = vpop.f32.mrb[0].mxu0
  %v274 = vadd.f32 %v45, %v273
  %v275 = vpop.f32.mrb[0].mxu0
  %276 = vmatprep.mubr.f32.mxu0 0.0
  %277 = vmatmul.mubr.f32.gmra.mrb[0].mxu0 %v100
  %v278 = vpop.f32.mrb[0].mxu0
  %v279 = vadd.f32 %v45, %v278
  %v280 = vpop.f32.mrb[0].mxu0
  %281 = vmatprep.mubr.f32.mxu0 0.0
  %282 = vmatmul.mubr.f32.gmra.mrb[0].mxu0 %v103
  %v283 = vpop.f32.mrb[0].mxu0
  %v284 = vadd.f32 %v45, %v283
  %v285 = vpop.f32.mrb[0].mxu0
  %286 = vmatprep.mubr.f32.mxu0 0.0
  %287 = vmatmul.mubr.f32.gmra.mrb[0].mxu0 %v106
  %v288 = vpop.f32.mrb[0].mxu0
  %v289 = vadd.f32 %v45, %v288
  %v290 = vpop.f32.mrb[0].mxu0
  %291 = vmatprep.mubr.f32.mxu0 0.0
  %292 = vmatmul.mubr.f32.gmra.mrb[0].mxu0 %v109
  %v293 = vpop.f32.mrb[0].mxu0
  %v294 = vadd.f32 %v45, %v293
  %v295 = vpop.f32.mrb[0].mxu0
  %296 = vmatprep.mubr.f32.mxu0 0.0
  %297 = vmatmul.mubr.f32.gmra.mrb[0].mxu0 %v112
  %v298 = vpop.f32.mrb[0].mxu0
  %v299 = vadd.f32 %v45, %v298
  %v300 = vpop.f32.mrb[0].mxu0
  %301 = vmatprep.mubr.f32.mxu0 0.0
  %302 = vmatmul.mubr.f32.gmra.mrb[0].mxu0 %v115
  %v303 = vpop.f32.mrb[0].mxu0
  %v304 = vadd.f32 %v45, %v303
  %v305 = vpop.f32.mrb[0].mxu0
  %306 = vmatprep.mubr.f32.mxu0 0.0
  %307 = vmatmul.mubr.f32.gmra.mrb[0].mxu0 %v118
  %v308 = vpop.f32.mrb[0].mxu0
  %v309 = vadd.f32 %v45, %v308
  %v310 = vpop.f32.mrb[0].mxu0
  %311 = vmatprep.mubr.f32.mxu0 0.0
  %312 = vmatmul.mubr.f32.gmra.mrb[0].mxu0 %v121
  %v313 = vpop.f32.mrb[0].mxu0
  %v314 = vadd.f32 %v45, %v313
  %v315 = vpop.f32.mrb[0].mxu0
  %316 = vdwg.mxu0
  %vm317 = vcmask 146432
  %318 = vst.msk [vmem:[%s3] sm:$0xff] %vm317, %v194
  %319 = vst.msk [vmem:[%s3 + $0x8] sm:$0xff] %vm317, %v199
  %320 = vst.msk [vmem:[%s3 + $0x10] sm:$0xff] %vm317, %v204
  %321 = vst.msk [vmem:[%s3 + $0x18] sm:$0xff] %vm317, %v209
  %322 = vst.msk [vmem:[%s3 + $0x20] sm:$0xff] %vm317, %v214
  %323 = vst.msk [vmem:[%s3 + $0x28] sm:$0xff] %vm317, %v219
  %324 = vst.msk [vmem:[%s3 + $0x30] sm:$0xff] %vm317, %v224
  %325 = vst.msk [vmem:[%s3 + $0x38] sm:$0xff] %vm317, %v229
  %326 = vst.msk [vmem:[%s3 + $0x40] sm:$0xff] %vm317, %v234
  %327 = vst.msk [vmem:[%s3 + $0x48] sm:$0xff] %vm317, %v239
  %328 = vst.msk [vmem:[%s3 + $0x50] sm:$0xff] %vm317, %v244
  %329 = vst.msk [vmem:[%s3 + $0x58] sm:$0xff] %vm317, %v249
  %330 = vst.msk [vmem:[%s3 + $0x60] sm:$0xff] %vm317, %v254
  %331 = vst.msk [vmem:[%s3 + $0x68] sm:$0xff] %vm317, %v259
  %332 = vst.msk [vmem:[%s3 + $0x70] sm:$0xff] %vm317, %v264
  %333 = vst.msk [vmem:[%s3 + $0x78] sm:$0xff] %vm317, %v269
  %334 = vst.msk [vmem:[%s3 + $0x80] sm:$0xff] %vm317, %v274
  %335 = vst.msk [vmem:[%s3 + $0x88] sm:$0xff] %vm317, %v279
  %336 = vst.msk [vmem:[%s3 + $0x90] sm:$0xff] %vm317, %v284
  %337 = vst.msk [vmem:[%s3 + $0x98] sm:$0xff] %vm317, %v289
  %338 = vst.msk [vmem:[%s3 + $0xa0] sm:$0xff] %vm317, %v294
  %339 = vst.msk [vmem:[%s3 + $0xa8] sm:$0xff] %vm317, %v299
  %340 = vst.msk [vmem:[%s3 + $0xb0] sm:$0xff] %vm317, %v304
  %341 = vst.msk [vmem:[%s3 + $0xb8] sm:$0xff] %vm317, %v309
  %342 = vst.msk [vmem:[%s3 + $0xc0] sm:$0xff] %vm317, %v314
  // Predicated region
  $region14: #{tpu_custom_call.1} parent=0 // pred_check
    _
  $region15: #{tpu_custom_call.1} parent=0 // pred_check_branch
    %344 = sbr.rel (0) target = $region17
  $region16: #{tpu_custom_call.1} parent=0 // pred_region
    _
  $region17: #{tpu_custom_call.1} parent=0 // pred_fallthru
    _
  // Predicated region
  $region18: #{tpu_custom_call.1} parent=0 // pred_check
    _
  $region19: #{tpu_custom_call.1} parent=0 // pred_check_branch
    %346 = sbr.rel (0) target = $region21
  $region20: #{tpu_custom_call.1} parent=0 // pred_region
    _
  $region21: #{tpu_custom_call.1} parent=0 // pred_fallthru
    _

</llo_original>
